<compile_context>
chip_gen: v7x
topology: tpu7x:2x2x1
jax: 0.10.0
libtpu: 0.0.40
codegen_flags: <defaults>
</compile_context>

<pallas_src>
import functools

import jax
import jax.numpy as jnp
from jax import lax
from jax.experimental import pallas as pl
from jax.experimental.pallas import tpu as pltpu

_LANE = 128
_SUBLANE = 8
_MAX_TILE_ROWS = 2048             # 512-1024 row tiles already ~85% of HBM roofline
_TARGET_CHUNK_ELEMS = 8 * 1024    # ~8 f32 vregs per operand per inner-loop step
_VMEM_LIMIT_BYTES = 32 * 1024 * 1024


def _round_up(a, b):
    return -(-a // b) * b


def _round_down(a, b):
    return (a // b) * b


def _hw_config():
    """(core_splits, input_vmem_budget_bytes), generation-aware.

    v7x: 2 TensorCores/chip but only 64 MiB VMEM -> split the stream across
    cores and keep the input double-buffers small.  v5e/v6e: single TC.
    """
    try:
        kind = jax.devices()[0].device_kind.lower()
    except Exception:  # pragma: no cover - no device visible at trace time
        kind = ""
    is_v7 = ("v7" in kind) or ("tpu7" in kind)
    cores = 2 if is_v7 else 1
    input_budget = (6 if is_v7 else 8) * 1024 * 1024
    return cores, input_budget


def _choose_fold(n_samples, hidden):
    """Largest lane-fold f with f | N and N//f >= 8 (lane-dense width f*H)."""
    if hidden >= _LANE:
        return 1
    for f in range(_LANE // hidden, 0, -1):
        if n_samples % f == 0 and (n_samples // f) >= _SUBLANE:
            return f
    return 1


def _plan(rows, lane_w, itemsize, cores, input_budget, tile_rows=None):
    """Pick (tile_rows, chunk, steps_per_core, total_steps, needs_mask)."""
    lane_pad = _round_up(lane_w, _LANE)      # VMEM rows are lane-padded to 128
    # Inner single-pass chunk: sublane-aligned, bounded vreg footprint.
    chunk = max(_SUBLANE,
                min(_round_down(_TARGET_CHUNK_ELEMS // lane_pad, _SUBLANE),
                    256,
                    _round_down(rows, _SUBLANE)))
    if tile_rows is None:
        # 2 inputs x 2 pipeline buffers of lane-PADDED tiles inside the budget...
        budget_rows = max(chunk, input_budget // (2 * 2 * lane_pad * itemsize))
        rows_per_core = -(-rows // cores)
        # ...capped so each core still gets >= ~4 pipeline steps (DMA/compute
        # overlap) instead of one giant exposed DMA.
        pipe_rows = max(-(-rows_per_core // 4), chunk)
        tile_rows = min(budget_rows, _MAX_TILE_ROWS, pipe_rows)
    # Never make a block taller than the array; keep it sublane/chunk aligned.
    tile_rows = max(_SUBLANE,
                    _round_down(min(int(tile_rows), _round_down(rows, _SUBLANE)),
                                _SUBLANE))
    chunk = min(chunk, tile_rows)
    tile_rows = max(chunk, _round_down(tile_rows, chunk))
    total_steps = -(-rows // tile_rows)
    steps_per_core = -(-total_steps // cores)
    needs_mask = (cores * steps_per_core * tile_rows) != rows
    return tile_rows, chunk, steps_per_core, total_steps, needs_mask


def _popkl_sums_kernel(x0_ref, x1_ref, s0_ref, ss0_ref, s1_ref, ss1_ref, *,
                       rows_total, tile_rows, chunk, steps_per_core, needs_mask):
    """Single-pass per-(sublane, lane) sum / sum-of-squares of both streams."""
    c = pl.program_id(0)   # core split ("parallel")
    i = pl.program_id(1)   # streaming / reduction axis ("arbitrary")
    lane_w = x0_ref.shape[1]
    n_chunks = tile_rows // chunk
    groups = chunk // _SUBLANE

    @pl.when(i == 0)
    def _():
        s0_ref[...] = jnp.zeros_like(s0_ref)
        ss0_ref[...] = jnp.zeros_like(ss0_ref)
        s1_ref[...] = jnp.zeros_like(s1_ref)
        ss1_ref[...] = jnp.zeros_like(ss1_ref)

    if needs_mask:
        # Intended (unclamped) first row of this tile.  Rows at or beyond
        # `rows_total` (boundary-tile padding and fully-clamped duplicate
        # tiles) are zeroed before accumulation.
        tile_start = (c * steps_per_core + i) * tile_rows
        nvalid = jnp.clip(rows_total - tile_start, 0, tile_rows)
        row_iota = lax.broadcasted_iota(jnp.int32, (chunk, 1), 0)

    def body(k, carry):
        s0, q0, s1, q1 = carry
        r0 = pl.multiple_of(k * chunk, chunk)
        v0 = x0_ref[pl.ds(r0, chunk), :].astype(jnp.float32)
        v1 = x1_ref[pl.ds(r0, chunk), :].astype(jnp.float32)
        if needs_mask:
            ok = row_iota < (nvalid - k * chunk)          # (chunk, 1) bool
            v0 = jnp.where(ok, v0, 0.0)
            v1 = jnp.where(ok, v1, 0.0)
        # Single pass: each element is loaded from VMEM once; sum and
        # sum-of-squares come from the same in-vreg value.  The group reshape
        # keeps the cross-sublane (XLU) reduce out of the hot loop entirely.
        v0g = v0.reshape(groups, _SUBLANE, lane_w)
        v1g = v1.reshape(groups, _SUBLANE, lane_w)
        s0 = s0 + jnp.sum(v0g, axis=0)
        q0 = q0 + jnp.sum(v0g * v0g, axis=0)
        s1 = s1 + jnp.sum(v1g, axis=0)
        q1 = q1 + jnp.sum(v1g * v1g, axis=0)
        return s0, q0, s1, q1

    z = jnp.zeros((_SUBLANE, lane_w), jnp.float32)
    s0, q0, s1, q1 = lax.fori_loop(0, n_chunks, body, (z, z, z, z))

    s0_ref[...] += s0[None]
    ss0_ref[...] += q0[None]
    s1_ref[...] += s1[None]
    ss1_ref[...] += q1[None]


def _streaming_moments(x0_rows, x1_rows, *, tile_rows, chunk, steps_per_core,
                       total_steps, cores, needs_mask):
    rows, lane_w = x0_rows.shape
    last_block = total_steps - 1

    def in_map(c, i):
        # Clamp so duplicate trailing steps (when cores * steps_per_core
        # over-covers the stream) re-fetch the last valid tile; their rows are
        # masked to zero inside the kernel.
        return (jnp.minimum(c * steps_per_core + i, last_block), 0)

    block_in = pl.BlockSpec((tile_rows, lane_w), in_map)
    # NOTE: a third pipeline buffer (pipeline_mode=pl.Buffered(3)) is a cheap
    # A/B once tiles shrink on v7x; left at the default double-buffering here.
    block_out = pl.BlockSpec((1, _SUBLANE, lane_w), lambda c, i: (c, 0, 0))
    out_sds = jax.ShapeDtypeStruct((cores, _SUBLANE, lane_w), jnp.float32)

    kernel = functools.partial(
        _popkl_sums_kernel, rows_total=rows, tile_rows=tile_rows, chunk=chunk,
        steps_per_core=steps_per_core, needs_mask=needs_mask)

    n_elems = rows * lane_w
    itemsize = jnp.dtype(x0_rows.dtype).itemsize
    cost = pl.CostEstimate(flops=6 * n_elems, transcendentals=0,
                           bytes_accessed=2 * n_elems * itemsize)

    return pl.pallas_call(
        kernel,
        out_shape=(out_sds, out_sds, out_sds, out_sds),
        grid_spec=pltpu.PrefetchScalarGridSpec(
            num_scalar_prefetch=0,
            grid=(cores, steps_per_core),
            in_specs=[block_in, block_in],
            out_specs=(block_out, block_out, block_out, block_out),
        ),
        compiler_params=pltpu.CompilerParams(
            # TODO(synk): on v7x verify in a profile that the leading size-2
            # axis lands one `c` per TensorCore; if not, switch it to
            # pltpu.CORE_PARALLEL.
            dimension_semantics=("parallel", "arbitrary"),
            vmem_limit_bytes=_VMEM_LIMIT_BYTES,
        ),
        cost_estimate=cost,
    )(x0_rows, x1_rows)


def _fold_lanes(a, fold, hidden):
    """(cores, 8, fold*H) partial sums -> (H,); lane l holds hidden unit l % H."""
    v = jnp.sum(a, axis=(0, 1))
    if fold > 1:
        v = v.reshape(fold, hidden).sum(axis=0)
    return v


def _moments_jnp(x):
    xf = x.astype(jnp.float32).reshape(-1, x.shape[-1])
    return jnp.sum(xf, axis=0), jnp.sum(xf * xf, axis=0)


def _epilogue(sum0, sumsq0, sum1, sumsq1, n_samples, *, symmetric, reg, reduction):
    n = jnp.float32(n_samples)
    mean_0 = sum0 / n
    mean_1 = sum1 / n
    # torch.var(unbiased=False) == E[x^2] - E[x]^2.  The clamp guards fp32
    # cancellation on near-constant units from producing log(<=0) -> NaN.
    # TODO(synk): for |mean| >> std over very large N, a pivoted / two-pass
    # variance would be more robust than this single-pass form.
    var_0 = jnp.maximum(sumsq0 / n - mean_0 * mean_0, jnp.float32(1e-12))
    var_1 = jnp.maximum(sumsq1 / n - mean_1 * mean_1, jnp.float32(1e-12))

    kl_div = 0.5 * (jnp.log(var_1 / var_0)
                    + (var_0 + (mean_0 - mean_1) ** 2) / var_1 - 1.0)
    if symmetric:
        reverse_kl = 0.5 * (jnp.log(var_0 / var_1)
                            + (var_1 + (mean_1 - mean_0) ** 2) / var_0 - 1.0)
        kl_div = 0.5 * (kl_div + reverse_kl)

    if reduction == 'mean':
        kl_loss = jnp.mean(kl_div)
    elif reduction == 'sum':
        kl_loss = jnp.sum(kl_div)
    else:
        # TODO(synk): reduction='none' returns a per-sample tensor in the torch
        # module; only the scalar reductions are implemented here.
        raise ValueError(f'Unsupported reduction mode: {reduction}')

    # mean over (B, T) of ||state||_2^2 along hidden == sum(x^2) / N
    reg_loss = jnp.sum(sumsq0) / n + jnp.sum(sumsq1) / n
    return kl_loss + jnp.float32(reg) * reg_loss


def population_kl(state_0, state_1, *, symmetric=True, reg=1e-3,
                  reduction='mean', tile_rows=None):
    """PopulationKL forward.  state_0, state_1: (B, T, H).  Returns scalar f32."""
    assert state_0.shape == state_1.shape
    B, T, H = state_0.shape
    N = B * T

    if N < _SUBLANE:
        # TODO(synk): tiny batches (B*T < 8) are not worth a kernel launch and
        # would need sub-sublane blocks; reduce them with plain jnp instead.
        sum0, sumsq0 = _moments_jnp(state_0)
        sum1, sumsq1 = _moments_jnp(state_1)
    else:
        cores, input_budget = _hw_config()
        fold = _choose_fold(N, H)
        lane_w = fold * H
        rows = N // fold
        # Pure, copy-free reshape of the contiguous (B, T, H) stream into a
        # lane-dense (rows, lane_w) view; no jnp.pad / slice => no extra HBM
        # pass.  Ragged tile boundaries are masked inside the kernel.
        x0_rows = state_0.reshape(rows, lane_w)
        x1_rows = state_1.reshape(rows, lane_w)
        itemsize = jnp.dtype(state_0.dtype).itemsize
        tile, chunk, steps_per_core, total_steps, needs_mask = _plan(
            rows, lane_w, itemsize, cores, input_budget, tile_rows)
        s0, ss0, s1, ss1 = _streaming_moments(
            x0_rows, x1_rows, tile_rows=tile, chunk=chunk,
            steps_per_core=steps_per_core, total_steps=total_steps,
            cores=cores, needs_mask=needs_mask)
        sum0 = _fold_lanes(s0, fold, H)
        sumsq0 = _fold_lanes(ss0, fold, H)
        sum1 = _fold_lanes(s1, fold, H)
        sumsq1 = _fold_lanes(ss1, fold, H)

    return _epilogue(sum0, sumsq0, sum1, sumsq1, N,
                     symmetric=symmetric, reg=reg, reduction=reduction)


def _population_kl_ref(state_0, state_1, *, symmetric=True, reg=1e-3,
                       reduction='mean'):
    """Pure-JAX reference mirroring the PyTorch module."""
    mean_0 = jnp.mean(state_0, axis=(0, 1), keepdims=True)
    mean_1 = jnp.mean(state_1, axis=(0, 1), keepdims=True)
    var_0 = jnp.var(state_0, axis=(0, 1), keepdims=True)
    var_1 = jnp.var(state_1, axis=(0, 1), keepdims=True)
    kl = 0.5 * (jnp.log(var_1 / var_0) + (var_0 + (mean_0 - mean_1) ** 2) / var_1 - 1)
    if symmetric:
        rkl = 0.5 * (jnp.log(var_0 / var_1) + (var_1 + (mean_1 - mean_0) ** 2) / var_0 - 1)
        kl = 0.5 * (kl + rkl)
    kl_loss = jnp.mean(kl) if reduction == 'mean' else jnp.sum(kl)
    reg_loss = (jnp.mean(jnp.sum(state_0 ** 2, axis=-1))
                + jnp.mean(jnp.sum(state_1 ** 2, axis=-1)))
    return kl_loss + reg * reg_loss


if __name__ == "__main__":
    key = jax.random.PRNGKey(0)
    k0, k1, k2, k3, k4, k5 = jax.random.split(key, 6)

    # Case 1: H=32 exercises the lane-folded (128-lane dense), aligned path.
    B, T, H = 2, 64, 32
    s0a = jax.random.normal(k0, (B, T, H), dtype=jnp.float32) * 0.5 + 1.0
    s1a = jax.random.normal(k1, (B, T, H), dtype=jnp.float32) * 0.7 + 1.2
    out1 = jax.block_until_ready(population_kl(s0a, s1a))
    ref1 = _population_kl_ref(s0a, s1a)
    assert jnp.allclose(out1, ref1, rtol=1e-4, atol=1e-5), (out1, ref1)

    out1s = jax.block_until_ready(population_kl(s0a, s1a, reduction='sum'))
    ref1s = _population_kl_ref(s0a, s1a, reduction='sum')
    assert jnp.allclose(out1s, ref1s, rtol=1e-4, atol=1e-5), (out1s, ref1s)

    # Case 2: H=50 -> fold=2 (lane_w=100); small explicit tile exercises the
    # multi-step accumulation and the masked boundary tile.
    B2, T2, H2 = 3, 40, 50
    s0b = jax.random.normal(k2, (B2, T2, H2), dtype=jnp.float32) * 0.4 + 0.8
    s1b = jax.random.normal(k3, (B2, T2, H2), dtype=jnp.float32) * 0.6 + 1.1
    out2 = jax.block_until_ready(population_kl(s0b, s1b, tile_rows=16))
    ref2 = _population_kl_ref(s0b, s1b)
    assert jnp.allclose(out2, ref2, rtol=1e-4, atol=1e-5), (out2, ref2)

    # Case 3: N=9 (odd) -> no fold; ragged boundary tile masked in-kernel.
    B3, T3, H3 = 1, 9, 50
    s0c = jax.random.normal(k4, (B3, T3, H3), dtype=jnp.float32) * 0.3 + 0.5
    s1c = jax.random.normal(k5, (B3, T3, H3), dtype=jnp.float32) * 0.5 + 0.9
    out3 = jax.block_until_ready(population_kl(s0c, s1c))
    ref3 = _population_kl_ref(s0c, s1c)
    assert jnp.allclose(out3, ref3, rtol=1e-4, atol=1e-5), (out3, ref3)

    print("KERNEL_OK")
</pallas_src>

<mosaic_0001>
module attributes {stable_mosaic.version = 11 : i64} {
  func.func @_popkl_sums_kernel(%arg0: i32, %arg1: i32, %arg2: memref<32x128xf32, #tpu.memory_space<vmem>>, %arg3: memref<32x128xf32, #tpu.memory_space<vmem>>, %arg4: memref<1x8x128xf32, #tpu.memory_space<vmem>>, %arg5: memref<1x8x128xf32, #tpu.memory_space<vmem>>, %arg6: memref<1x8x128xf32, #tpu.memory_space<vmem>>, %arg7: memref<1x8x128xf32, #tpu.memory_space<vmem>>) attributes {dimension_semantics = [#tpu.dimension_semantics<parallel>, #tpu.dimension_semantics<arbitrary>], iteration_bounds = array<i64: 1, 1>, scalar_prefetch = 0 : i64, scratch_operands = 0 : i64, tpu.core_type = #tpu.core_type<tc>, window_params = [{transform_indices = @transform_0, window_bounds = array<i64: 32, 128>}, {transform_indices = @transform_1, window_bounds = array<i64: 32, 128>}, {transform_indices = @transform_2, window_bounds = array<i64: 1, 8, 128>}, {transform_indices = @transform_3, window_bounds = array<i64: 1, 8, 128>}, {transform_indices = @transform_4, window_bounds = array<i64: 1, 8, 128>}, {transform_indices = @transform_5, window_bounds = array<i64: 1, 8, 128>}]} {
    %c0_i32 = arith.constant 0 : i32
    %0 = arith.cmpi eq, %arg1, %c0_i32 : i32
    %1 = arith.extui %0 : i1 to i32
    %c0_i32_0 = arith.constant 0 : i32
    %2 = arith.cmpi ne, %1, %c0_i32_0 : i32
    scf.if %2 {
      %cst_31 = arith.constant 0.000000e+00 : f32
      %38 = vector.broadcast %cst_31 : f32 to vector<1x8x128xf32>
      %c0_32 = arith.constant 0 : index
      %c0_33 = arith.constant 0 : index
      %c0_34 = arith.constant 0 : index
      %39 = vector.load %arg4[%c0_32, %c0_33, %c0_34] : memref<1x8x128xf32, #tpu.memory_space<vmem>>, vector<1x8x128xf32>
      tpu.vector_store %arg4[%c0_32, %c0_33, %c0_34], %38 {strides = array<i32>} : memref<1x8x128xf32, #tpu.memory_space<vmem>>, vector<1x8x128xf32>,
      %cst_35 = arith.constant 0.000000e+00 : f32
      %40 = vector.broadcast %cst_35 : f32 to vector<1x8x128xf32>
      %c0_36 = arith.constant 0 : index
      %c0_37 = arith.constant 0 : index
      %c0_38 = arith.constant 0 : index
      %41 = vector.load %arg5[%c0_36, %c0_37, %c0_38] : memref<1x8x128xf32, #tpu.memory_space<vmem>>, vector<1x8x128xf32>
      tpu.vector_store %arg5[%c0_36, %c0_37, %c0_38], %40 {strides = array<i32>} : memref<1x8x128xf32, #tpu.memory_space<vmem>>, vector<1x8x128xf32>,
      %cst_39 = arith.constant 0.000000e+00 : f32
      %42 = vector.broadcast %cst_39 : f32 to vector<1x8x128xf32>
      %c0_40 = arith.constant 0 : index
      %c0_41 = arith.constant 0 : index
      %c0_42 = arith.constant 0 : index
      %43 = vector.load %arg6[%c0_40, %c0_41, %c0_42] : memref<1x8x128xf32, #tpu.memory_space<vmem>>, vector<1x8x128xf32>
      tpu.vector_store %arg6[%c0_40, %c0_41, %c0_42], %42 {strides = array<i32>} : memref<1x8x128xf32, #tpu.memory_space<vmem>>, vector<1x8x128xf32>,
      %cst_43 = arith.constant 0.000000e+00 : f32
      %44 = vector.broadcast %cst_43 : f32 to vector<1x8x128xf32>
      %c0_44 = arith.constant 0 : index
      %c0_45 = arith.constant 0 : index
      %c0_46 = arith.constant 0 : index
      %45 = vector.load %arg7[%c0_44, %c0_45, %c0_46] : memref<1x8x128xf32, #tpu.memory_space<vmem>>, vector<1x8x128xf32>
      tpu.vector_store %arg7[%c0_44, %c0_45, %c0_46], %44 {strides = array<i32>} : memref<1x8x128xf32, #tpu.memory_space<vmem>>, vector<1x8x128xf32>,
    } else {
    }
    %cst = arith.constant 0.000000e+00 : f32
    %3 = vector.broadcast %cst : f32 to vector<8x128xf32>
    %c0_i32_1 = arith.constant 0 : i32
    %c32_i32 = arith.constant 32 : i32
    %4 = arith.muli %c0_i32_1, %c32_i32 : i32
    %5 = tpu.assume_multiple %4, 32 : i32
    %6 = arith.index_cast %5 : i32 to index
    %c0 = arith.constant 0 : index
    %7 = vector.load %arg2[%6, %c0] : memref<32x128xf32, #tpu.memory_space<vmem>>, vector<32x128xf32>
    %8 = arith.index_cast %5 : i32 to index
    %c0_2 = arith.constant 0 : index
    %9 = vector.load %arg3[%8, %c0_2] : memref<32x128xf32, #tpu.memory_space<vmem>>, vector<32x128xf32>
    %10 = vector.shape_cast %7 : vector<32x128xf32> to vector<4x8x128xf32>
    %11 = vector.shape_cast %9 : vector<32x128xf32> to vector<4x8x128xf32>
    %cst_3 = arith.constant dense<0.000000e+00> : vector<8x128xf32>
    %12 = vector.multi_reduction <add>, %10, %cst_3 [0] : vector<4x8x128xf32> to vector<8x128xf32>
    %13 = arith.addf %3, %12 : vector<8x128xf32>
    %14 = arith.mulf %10, %10 : vector<4x8x128xf32>
    %cst_4 = arith.constant dense<0.000000e+00> : vector<8x128xf32>
    %15 = vector.multi_reduction <add>, %14, %cst_4 [0] : vector<4x8x128xf32> to vector<8x128xf32>
    %16 = arith.addf %3, %15 : vector<8x128xf32>
    %cst_5 = arith.constant dense<0.000000e+00> : vector<8x128xf32>
    %17 = vector.multi_reduction <add>, %11, %cst_5 [0] : vector<4x8x128xf32> to vector<8x128xf32>
    %18 = arith.addf %3, %17 : vector<8x128xf32>
    %19 = arith.mulf %11, %11 : vector<4x8x128xf32>
    %cst_6 = arith.constant dense<0.000000e+00> : vector<8x128xf32>
    %20 = vector.multi_reduction <add>, %19, %cst_6 [0] : vector<4x8x128xf32> to vector<8x128xf32>
    %21 = arith.addf %3, %20 : vector<8x128xf32>
    %c1_i32 = arith.constant 1 : i32
    %c0_7 = arith.constant 0 : index
    %c0_8 = arith.constant 0 : index
    %c0_9 = arith.constant 0 : index
    %22 = vector.load %arg4[%c0_7, %c0_8, %c0_9] : memref<1x8x128xf32, #tpu.memory_space<vmem>>, vector<1x8x128xf32>
    %23 = vector.shape_cast %13 : vector<8x128xf32> to vector<1x8x128xf32>
    %24 = arith.addf %22, %23 : vector<1x8x128xf32>
    %c0_10 = arith.constant 0 : index
    %c0_11 = arith.constant 0 : index
    %c0_12 = arith.constant 0 : index
    %25 = vector.load %arg4[%c0_10, %c0_11, %c0_12] : memref<1x8x128xf32, #tpu.memory_space<vmem>>, vector<1x8x128xf32>
    tpu.vector_store %arg4[%c0_10, %c0_11, %c0_12], %24 {strides = array<i32>} : memref<1x8x128xf32, #tpu.memory_space<vmem>>, vector<1x8x128xf32>,
    %c0_13 = arith.constant 0 : index
    %c0_14 = arith.constant 0 : index
    %c0_15 = arith.constant 0 : index
    %26 = vector.load %arg5[%c0_13, %c0_14, %c0_15] : memref<1x8x128xf32, #tpu.memory_space<vmem>>, vector<1x8x128xf32>
    %27 = vector.shape_cast %16 : vector<8x128xf32> to vector<1x8x128xf32>
    %28 = arith.addf %26, %27 : vector<1x8x128xf32>
    %c0_16 = arith.constant 0 : index
    %c0_17 = arith.constant 0 : index
    %c0_18 = arith.constant 0 : index
    %29 = vector.load %arg5[%c0_16, %c0_17, %c0_18] : memref<1x8x128xf32, #tpu.memory_space<vmem>>, vector<1x8x128xf32>
    tpu.vector_store %arg5[%c0_16, %c0_17, %c0_18], %28 {strides = array<i32>} : memref<1x8x128xf32, #tpu.memory_space<vmem>>, vector<1x8x128xf32>,
    %c0_19 = arith.constant 0 : index
    %c0_20 = arith.constant 0 : index
    %c0_21 = arith.constant 0 : index
    %30 = vector.load %arg6[%c0_19, %c0_20, %c0_21] : memref<1x8x128xf32, #tpu.memory_space<vmem>>, vector<1x8x128xf32>
    %31 = vector.shape_cast %18 : vector<8x128xf32> to vector<1x8x128xf32>
    %32 = arith.addf %30, %31 : vector<1x8x128xf32>
    %c0_22 = arith.constant 0 : index
    %c0_23 = arith.constant 0 : index
    %c0_24 = arith.constant 0 : index
    %33 = vector.load %arg6[%c0_22, %c0_23, %c0_24] : memref<1x8x128xf32, #tpu.memory_space<vmem>>, vector<1x8x128xf32>
    tpu.vector_store %arg6[%c0_22, %c0_23, %c0_24], %32 {strides = array<i32>} : memref<1x8x128xf32, #tpu.memory_space<vmem>>, vector<1x8x128xf32>,
    %c0_25 = arith.constant 0 : index
    %c0_26 = arith.constant 0 : index
    %c0_27 = arith.constant 0 : index
    %34 = vector.load %arg7[%c0_25, %c0_26, %c0_27] : memref<1x8x128xf32, #tpu.memory_space<vmem>>, vector<1x8x128xf32>
    %35 = vector.shape_cast %21 : vector<8x128xf32> to vector<1x8x128xf32>
    %36 = arith.addf %34, %35 : vector<1x8x128xf32>
    %c0_28 = arith.constant 0 : index
    %c0_29 = arith.constant 0 : index
    %c0_30 = arith.constant 0 : index
    %37 = vector.load %arg7[%c0_28, %c0_29, %c0_30] : memref<1x8x128xf32, #tpu.memory_space<vmem>>, vector<1x8x128xf32>
    tpu.vector_store %arg7[%c0_28, %c0_29, %c0_30], %36 {strides = array<i32>} : memref<1x8x128xf32, #tpu.memory_space<vmem>>, vector<1x8x128xf32>,
    return
  }
  func.func @transform_0(%arg0: i32, %arg1: i32) -> (i32, i32) {
    %c1_i32 = arith.constant 1 : i32
    %0 = arith.muli %arg0, %c1_i32 : i32
    %1 = arith.addi %0, %arg1 : i32
    %c0_i32 = arith.constant 0 : i32
    %2 = arith.minsi %1, %c0_i32 : i32
    %c0_i32_0 = arith.constant 0 : i32
    %c0_i32_1 = arith.constant 0 : i32
    return %2, %c0_i32_0 : i32, i32
  }
  func.func @transform_1(%arg0: i32, %arg1: i32) -> (i32, i32) {
    %c1_i32 = arith.constant 1 : i32
    %0 = arith.muli %arg0, %c1_i32 : i32
    %1 = arith.addi %0, %arg1 : i32
    %c0_i32 = arith.constant 0 : i32
    %2 = arith.minsi %1, %c0_i32 : i32
    %c0_i32_0 = arith.constant 0 : i32
    %c0_i32_1 = arith.constant 0 : i32
    return %2, %c0_i32_0 : i32, i32
  }
  func.func @transform_2(%arg0: i32, %arg1: i32) -> (i32, i32, i32) {
    %c0_i32 = arith.constant 0 : i32
    %c0_i32_0 = arith.constant 0 : i32
    %c0_i32_1 = arith.constant 0 : i32
    return %arg0, %c0_i32, %c0_i32_0 : i32, i32, i32
  }
  func.func @transform_3(%arg0: i32, %arg1: i32) -> (i32, i32, i32) {
    %c0_i32 = arith.constant 0 : i32
    %c0_i32_0 = arith.constant 0 : i32
    %c0_i32_1 = arith.constant 0 : i32
    return %arg0, %c0_i32, %c0_i32_0 : i32, i32, i32
  }
  func.func @transform_4(%arg0: i32, %arg1: i32) -> (i32, i32, i32) {
    %c0_i32 = arith.constant 0 : i32
    %c0_i32_0 = arith.constant 0 : i32
    %c0_i32_1 = arith.constant 0 : i32
    return %arg0, %c0_i32, %c0_i32_0 : i32, i32, i32
  }
  func.func @transform_5(%arg0: i32, %arg1: i32) -> (i32, i32, i32) {
    %c0_i32 = arith.constant 0 : i32
    %c0_i32_0 = arith.constant 0 : i32
    %c0_i32_1 = arith.constant 0 : i32
    return %arg0, %c0_i32, %c0_i32_0 : i32, i32, i32
  }
}

</mosaic_0001>

<llo_original>
// kernel: tpu_custom_call.1
$region0: #{tpu_custom_call.1}
  #allocation0 [shape = 'u32[]', space=smem, size = 0x4, offset = 0x4, fixed_abs, tag = 'smem constant byte address 0x4 - core index']
  #allocation1 [shape = 'u32[144,128]{1,0:T(1,128)}', space=vmem, size = 0x12000, scoped, tag = 'internal scratch']
  %s0 = inlined_call_operand.hbm [shape: f32[32,128], index: 0, kind: input, shape index: {}]
  %s1 = inlined_call_operand.hbm [shape: f32[32,128], index: 1, kind: input, shape index: {}]
  %s2 = inlined_call_operand.hbm [shape: f32[1,8,128], index: 2, kind: output, shape index: {0}]
  %s3 = inlined_call_operand.hbm [shape: f32[1,8,128], index: 3, kind: output, shape index: {1}]
  %s4 = inlined_call_operand.hbm [shape: f32[1,8,128], index: 4, kind: output, shape index: {2}]
  %s5 = inlined_call_operand.hbm [shape: f32[1,8,128], index: 5, kind: output, shape index: {3}]
  %6 = xla_tuple %s2, %s3, %s4, %s5
  %s7 = sld [smem:[#allocation0]]
  $region54: #{tpu_custom_call.1} parent=0
    _
  %s9 = ssub.s32 1, %s7
  %s10 = scalar_select 0, %s9, %s7
  $region1: #{tpu_custom_call.1} parent=0
    #allocation2 [shape = 'u8[16384]{0}', space=vmem, size = 0x4000, scoped, tag = 'input window, operand 0, single buffered']
    #allocation3 [shape = 's32[1]{0}', space=sflag, size = 0x4, scoped, tag = 'scoped memory for tpu_custom_call.1']
    #allocation4 [shape = 's32[1]{0}', space=sflag, size = 0x4, scoped, tag = 'scoped memory for tpu_custom_call.1']
    #allocation5 [shape = 'u8[16384]{0}', space=vmem, size = 0x4000, scoped, tag = 'input window, operand 1, single buffered']
    #allocation6 [shape = 's32[1]{0}', space=sflag, size = 0x4, scoped, tag = 'scoped memory for tpu_custom_call.1']
    #allocation7 [shape = 'u8[4096]{0}', space=vmem, size = 0x1000, scoped, tag = 'output window, operand 0, single buffered']
    #allocation8 [shape = 'u8[4096]{0}', space=vmem, size = 0x1000, scoped, tag = 'output window, operand 1, single buffered']
    #allocation9 [shape = 's32[1]{0}', space=sflag, size = 0x4, scoped, tag = 'scoped memory for tpu_custom_call.1']
    #allocation10 [shape = 'u8[4096]{0}', space=vmem, size = 0x1000, scoped, tag = 'output window, operand 2, single buffered']
    #allocation11 [shape = 'u8[4096]{0}', space=vmem, size = 0x1000, scoped, tag = 'output window, operand 3, single buffered']
    #allocation12 [shape = 's32[1]{0}', space=sflag, size = 0x4, scoped, tag = 'scoped memory for tpu_custom_call.1']
    %11 = vsyncpa [#allocation3], 0
    %12 = vsyncpa [#allocation6], 0
    %13 = vsyncpa [#allocation4], 0
    %14 = vsyncpa [#allocation9], 0
    %15 = vsyncpa [#allocation12], 0
    // Predicated region
    $region2: #{tpu_custom_call.1} parent=1 // pred_check
      _
    $region3: #{tpu_custom_call.1} parent=1 // pred_check_branch
      %17 = sbr.rel (0) target = $region5
    $region4: #{tpu_custom_call.1} parent=1 // pred_region
      %s18 = sadd.s32 0, 0
      %p19 = scmp.lt.s32.totalorder %s18, 0
      %s20 = scalar_select %p19, %s18, 0
      %s21 = smul.u32 4, %s20
      %s23 = ssub.s32 512, 512
      %24 = vsyncadd [#allocation3], %s23
      %s25 = smul.addr %s21, 128
      %s26 = scalar_lea.hbm %s0, %s25
      %s27 = sshll.u32 [#allocation2], 4
      %s28 = int_to_ptr.vmem [resolvable:$true] %s27
      %33 = dma.hbm_to_vmem [thread:$0]  %s26, 512, %s28, [#allocation3], 128, 128, 8
    $region5: #{tpu_custom_call.1} parent=1 // pred_fallthru
      _
    // Predicated region
    $region6: #{tpu_custom_call.1} parent=1 // pred_check
      _
    $region7: #{tpu_custom_call.1} parent=1 // pred_check_branch
      %35 = sbr.rel (0) target = $region9
    $region8: #{tpu_custom_call.1} parent=1 // pred_region
      %s36 = sadd.s32 0, 0
      %p37 = scmp.lt.s32.totalorder %s36, 0
      %s38 = scalar_select %p37, %s36, 0
      %s39 = smul.u32 4, %s38
      %s41 = ssub.s32 512, 512
      %42 = vsyncadd [#allocation6], %s41
      %s43 = smul.addr %s39, 128
      %s44 = scalar_lea.hbm %s1, %s43
      %s45 = sshll.u32 [#allocation5], 4
      %s46 = int_to_ptr.vmem [resolvable:$true] %s45
      %51 = dma.hbm_to_vmem [thread:$0]  %s44, 512, %s46, [#allocation6], 128, 128, 8
    $region9: #{tpu_custom_call.1} parent=1 // pred_fallthru
      _
    // Predicated region
    $region10: #{tpu_custom_call.1} parent=1 // pred_check
      _
    $region11: #{tpu_custom_call.1} parent=1 // pred_check_branch
      %53 = sbr.rel (0) target = $region13
    $region12: #{tpu_custom_call.1} parent=1 // pred_region
      %54 = dma.done [#allocation3], 512
    $region13: #{tpu_custom_call.1} parent=1 // pred_fallthru
      _
    // Predicated region
    $region14: #{tpu_custom_call.1} parent=1 // pred_check
      _
    $region15: #{tpu_custom_call.1} parent=1 // pred_check_branch
      %56 = sbr.rel (0) target = $region17
    $region16: #{tpu_custom_call.1} parent=1 // pred_region
      %57 = dma.done [#allocation6], 512
    $region17: #{tpu_custom_call.1} parent=1 // pred_fallthru
      _
    %s58 = sadd.s32 0, 0
    %p59 = scmp.lt.s32.totalorder %s58, 0
    %s60 = scalar_select %p59, %s58, 0
    %s61 = smul.u32 4, %s60
    %s62 = sadd.s32 0, 0
    %p63 = scmp.lt.s32.totalorder %s62, 0
    %s64 = scalar_select %p63, %s62, 0
    %s65 = smul.u32 4, %s64
    %p66 = scmp.eq.s32.totalorder 0, 0
    // Predicated region
    $region18: #{tpu_custom_call.1} parent=1 // pred_check
      %p67 = pneg %p66
    $region19: #{tpu_custom_call.1} parent=1 // pred_check_branch
      %69 = sbr.rel (%p67) target = $region21
    $region20: #{tpu_custom_call.1} parent=1 // pred_region
      %70 = vst [vmem:[#allocation7] sm:$0xff] 0.0
      %71 = vst [vmem:[#allocation8] sm:$0xff] 0.0
      %72 = vst [vmem:[#allocation10] sm:$0xff] 0.0
      %73 = vst [vmem:[#allocation11] sm:$0xff] 0.0
    $region21: #{tpu_custom_call.1} parent=1 // pred_fallthru
      _
    %v74 = vld [vmem:[#allocation2] sm:$0xff]
    %v75 = vld [vmem:[#allocation2 + $0x8] sm:$0xff]
    %v76 = vld [vmem:[#allocation2 + $0x10] sm:$0xff]
    %v77 = vld [vmem:[#allocation2 + $0x18] sm:$0xff]
    %v78 = vld [vmem:[#allocation5] sm:$0xff]
    %v79 = vld [vmem:[#allocation5 + $0x8] sm:$0xff]
    %v80 = vld [vmem:[#allocation5 + $0x10] sm:$0xff]
    %v81 = vld [vmem:[#allocation5 + $0x18] sm:$0xff]
    %v82 = vadd.f32 %v74, %v75
    %v83 = vadd.f32 %v82, %v76
    %v84 = vadd.f32 %v83, %v77
    %v85 = vadd.f32 %v84, 0.0
    %v86 = vmul.f32 %v74, %v74
    %v87 = vmul.f32 %v75, %v75
    %v88 = vmul.f32 %v76, %v76
    %v89 = vmul.f32 %v77, %v77
    %v90 = vadd.f32 %v86, %v87
    %v91 = vadd.f32 %v90, %v88
    %v92 = vadd.f32 %v91, %v89
    %v93 = vadd.f32 %v92, 0.0
    %v94 = vadd.f32 %v78, %v79
    %v95 = vadd.f32 %v94, %v80
    %v96 = vadd.f32 %v95, %v81
    %v97 = vadd.f32 %v96, 0.0
    %v98 = vmul.f32 %v78, %v78
    %v99 = vmul.f32 %v79, %v79
    %v100 = vmul.f32 %v80, %v80
    %v101 = vmul.f32 %v81, %v81
    %v102 = vadd.f32 %v98, %v99
    %v103 = vadd.f32 %v102, %v100
    %v104 = vadd.f32 %v103, %v101
    %v105 = vadd.f32 %v104, 0.0
    %v106 = vld [vmem:[#allocation7] sm:$0xff]
    %v107 = vadd.f32 %v106, %v85
    %108 = vst [vmem:[#allocation7] sm:$0xff] %v107
    %v109 = vld [vmem:[#allocation8] sm:$0xff]
    %v110 = vadd.f32 %v109, %v93
    %111 = vst [vmem:[#allocation8] sm:$0xff] %v110
    %v112 = vld [vmem:[#allocation10] sm:$0xff]
    %v113 = vadd.f32 %v112, %v97
    %114 = vst [vmem:[#allocation10] sm:$0xff] %v113
    %v115 = vld [vmem:[#allocation11] sm:$0xff]
    %v116 = vadd.f32 %v115, %v105
    %117 = vst [vmem:[#allocation11] sm:$0xff] %v116
    // Predicated region
    $region22: #{tpu_custom_call.1} parent=1 // pred_check
      _
    $region23: #{tpu_custom_call.1} parent=1 // pred_check_branch
      %119 = sbr.rel (0) target = $region25
    $region24: #{tpu_custom_call.1} parent=1 // pred_region
      %s121 = ssub.s32 128, 128
      %122 = vsyncadd [#allocation4], %s121
      %s124 = sshll.u32 [#allocation7], 4
      %s125 = int_to_ptr.vmem [resolvable:$true] %s124
      %127 = dma.vmem_to_hbm [thread:$0]  %s125, 128, %s2, [#allocation4]
    $region25: #{tpu_custom_call.1} parent=1 // pred_fallthru
      _
    // Predicated region
    $region26: #{tpu_custom_call.1} parent=1 // pred_check
      _
    $region27: #{tpu_custom_call.1} parent=1 // pred_check_branch
      %129 = sbr.rel (0) target = $region29
    $region28: #{tpu_custom_call.1} parent=1 // pred_region
      %s131 = ssub.s32 128, 128
      %132 = vsyncadd [#allocation9], %s131
      %s134 = sshll.u32 [#allocation8], 4
      %s135 = int_to_ptr.vmem [resolvable:$true] %s134
      %137 = dma.vmem_to_hbm [thread:$0]  %s135, 128, %s3, [#allocation9]
    $region29: #{tpu_custom_call.1} parent=1 // pred_fallthru
      _
    // Predicated region
    $region30: #{tpu_custom_call.1} parent=1 // pred_check
      _
    $region31: #{tpu_custom_call.1} parent=1 // pred_check_branch
      %139 = sbr.rel (0) target = $region33
    $region32: #{tpu_custom_call.1} parent=1 // pred_region
      %s141 = ssub.s32 128, 128
      %142 = vsyncadd [#allocation9], %s141
      %s144 = sshll.u32 [#allocation10], 4
      %s145 = int_to_ptr.vmem [resolvable:$true] %s144
      %147 = dma.vmem_to_hbm [thread:$0]  %s145, 128, %s4, [#allocation9]
    $region33: #{tpu_custom_call.1} parent=1 // pred_fallthru
      _
    // Predicated region
    $region34: #{tpu_custom_call.1} parent=1 // pred_check
      _
    $region35: #{tpu_custom_call.1} parent=1 // pred_check_branch
      %149 = sbr.rel (0) target = $region37
    $region36: #{tpu_custom_call.1} parent=1 // pred_region
      %s151 = ssub.s32 128, 128
      %152 = vsyncadd [#allocation12], %s151
      %s154 = sshll.u32 [#allocation11], 4
      %s155 = int_to_ptr.vmem [resolvable:$true] %s154
      %157 = dma.vmem_to_hbm [thread:$0]  %s155, 128, %s5, [#allocation12]
    $region37: #{tpu_custom_call.1} parent=1 // pred_fallthru
      _
    // Predicated region
    $region38: #{tpu_custom_call.1} parent=1 // pred_check
      _
    $region39: #{tpu_custom_call.1} parent=1 // pred_check_branch
      %159 = sbr.rel (0) target = $region41
    $region40: #{tpu_custom_call.1} parent=1 // pred_region
      %160 = dma.done [#allocation4], 128
    $region41: #{tpu_custom_call.1} parent=1 // pred_fallthru
      _
    // Predicated region
    $region42: #{tpu_custom_call.1} parent=1 // pred_check
      _
    $region43: #{tpu_custom_call.1} parent=1 // pred_check_branch
      %162 = sbr.rel (0) target = $region45
    $region44: #{tpu_custom_call.1} parent=1 // pred_region
      %163 = dma.done [#allocation9], 128
    $region45: #{tpu_custom_call.1} parent=1 // pred_fallthru
      _
    // Predicated region
    $region46: #{tpu_custom_call.1} parent=1 // pred_check
      _
    $region47: #{tpu_custom_call.1} parent=1 // pred_check_branch
      %165 = sbr.rel (0) target = $region49
    $region48: #{tpu_custom_call.1} parent=1 // pred_region
      %166 = dma.done [#allocation9], 128
    $region49: #{tpu_custom_call.1} parent=1 // pred_fallthru
      _
    // Predicated region
    $region50: #{tpu_custom_call.1} parent=1 // pred_check
      _
    $region51: #{tpu_custom_call.1} parent=1 // pred_check_branch
      %168 = sbr.rel (0) target = $region53
    $region52: #{tpu_custom_call.1} parent=1 // pred_region
      %169 = dma.done [#allocation12], 128
    $region53: #{tpu_custom_call.1} parent=1 // pred_fallthru
      _
    %170 = vsyncpa [#allocation3], 1
    %171 = vsyncpa [#allocation6], 1
    %172 = vsyncpa [#allocation4], 1
    %173 = vsyncpa [#allocation9], 1
    %174 = vsyncpa [#allocation12], 1

</llo_original>
